<compile_context>
chip_gen: v7x
topology: tpu7x:2x2x1
jax: 0.10.0
libtpu: 0.0.40
codegen_flags: <defaults>
</compile_context>

<pallas_src>
import functools

import jax
import jax.numpy as jnp
from jax.experimental import pallas as pl
from jax.experimental.pallas import tpu as pltpu

_LANE = 128
_SUBLANE = 8


def _bce_with_logits(x, t):
    # Numerically-stable BCE-with-logits:
    #   loss = max(x, 0) - x * t + log(1 + exp(-|x|))
    return jnp.maximum(x, 0.0) - x * t + jnp.log1p(jnp.exp(-jnp.abs(x)))


def _elo_loss_kernel(x_ref, t_ref, acc_ref, *, tile_rows, lane, main_rows,
                     tiles_per_core, total_tiles, needs_edge):
    """One grid step: BCE on a (tile_rows, lane) slab, partial-sum into acc.

    Grid = (num_cores [parallel], tiles_per_core [arbitrary]).
    acc_ref is the per-core resident (8, lane) f32 accumulator.
    """
    i = pl.program_id(1)

    @pl.when(i == 0)
    def _init():
        acc_ref[...] = jnp.zeros_like(acc_ref)

    x = x_ref[...].astype(jnp.float32)   # logits (score differences)
    t = t_ref[...].astype(jnp.float32)   # target probabilities in [0, 1]
    per = _bce_with_logits(x, t)

    def _accumulate(vals):
        if tile_rows % _SUBLANE == 0:
            # Leading-axis (vreg-batch) adds only: pure VPU, no per-step
            # cross-lane XLU reduce.  Reshape groups whole (8,128) tiles.
            acc_ref[...] += vals.reshape(tile_rows // _SUBLANE, _SUBLANE,
                                         lane).sum(axis=0)
        else:
            # Tiny single-tile case (block == full row dim, < 8 sublanes or
            # not a multiple of 8): one small cross-sublane reduce is fine.
            acc_ref[0:1, :] = acc_ref[0:1, :] + jnp.sum(vals, axis=0,
                                                        keepdims=True)

    if not needs_edge:
        # Fast path: the grid exactly covers main_rows — no masking anywhere.
        _accumulate(per)
    else:
        gt = pl.program_id(0) * tiles_per_core + i   # global tile index
        is_edge = gt >= total_tiles - 1              # partial last tile or
                                                     # duplicate (clamped) tile

        @pl.when(jnp.logical_not(is_edge))
        def _fast():
            _accumulate(per)

        @pl.when(is_edge)
        def _edge():
            # Rows of this tile that are real data (0 for duplicate tiles).
            # Row-level compare — no per-element global index, no i32 overflow.
            valid = jnp.clip(main_rows - gt * tile_rows, 0, tile_rows)
            row = jax.lax.broadcasted_iota(jnp.int32, (tile_rows, lane), 0)
            _accumulate(jnp.where(row < valid, per, 0.0))


def _round_up(x, m):
    return ((x + m - 1) // m) * m


def _default_config(itemsize):
    """Per-generation defaults: (tile_rows, num_cores)."""
    kind = ""
    try:
        kind = jax.devices()[0].device_kind.lower()
    except Exception:
        pass
    is_v7 = "v7" in kind
    # ~4 MiB per input block on v7x (64 MiB VMEM/TC), ~8 MiB on v5e/v6e
    # (128 MiB VMEM); double-buffered x 2 inputs stays well under the limit.
    target_bytes = (4 if is_v7 else 8) * 1024 * 1024
    tile_rows = max(_SUBLANE,
                    _round_up(target_bytes // (_LANE * itemsize), _SUBLANE))
    num_cores = 2 if is_v7 else 1   # v5e/v6e have a single TensorCore per chip
    return tile_rows, num_cores


def elo_loss(output, target, *, tile_rows=None, num_cores=None,
             interpret=False):
    """output, target: same-shaped float arrays.  Returns scalar mean loss (f32)."""
    assert output.shape == target.shape, (output.shape, target.shape)
    total = int(output.size)
    if total == 0:
        return jnp.float32(0.0)

    lane = _LANE
    itemsize = max(output.dtype.itemsize, target.dtype.itemsize)
    d_tile_rows, d_num_cores = _default_config(itemsize)
    tile_rows = d_tile_rows if tile_rows is None else tile_rows
    num_cores = d_num_cores if num_cores is None else num_cores
    tile_rows = max(_SUBLANE, _round_up(int(tile_rows), _SUBLANE))
    num_cores = max(1, int(num_cores))

    x_flat = output.reshape(-1)
    t_flat = target.reshape(-1)

    main_rows = total // lane
    main = main_rows * lane
    rem = total - main

    loss_sum = jnp.float32(0.0)

    if main_rows > 0:
        # Lane-dense [rows, 128] view of the aligned prefix.  When total is a
        # multiple of 128 the slice is full-extent (elided) and the reshape of
        # the contiguous array is free — no padded copy is materialized.
        x2 = x_flat[:main].reshape(main_rows, lane)
        t2 = t_flat[:main].reshape(main_rows, lane)

        tile_rows_eff = main_rows if main_rows <= tile_rows else tile_rows
        total_tiles = pl.cdiv(main_rows, tile_rows_eff)
        num_cores_eff = max(1, min(num_cores, total_tiles))
        tiles_per_core = pl.cdiv(total_tiles, num_cores_eff)
        # Edge handling is compiled in only when the rectangular grid does not
        # exactly cover main_rows (partial last tile and/or duplicate tiles).
        needs_edge = (num_cores_eff * tiles_per_core != total_tiles) or (
            main_rows != total_tiles * tile_rows_eff)

        kernel = functools.partial(
            _elo_loss_kernel,
            tile_rows=tile_rows_eff, lane=lane, main_rows=main_rows,
            tiles_per_core=tiles_per_core, total_tiles=total_tiles,
            needs_edge=needs_edge)

        def in_map(c, i):
            # Clamp so duplicate (out-of-range) grid steps re-read the last
            # real tile instead of DMA-ing out of bounds; their contribution
            # is masked to zero inside the kernel.
            return (jnp.minimum(c * tiles_per_core + i, total_tiles - 1), 0)

        cost = pl.CostEstimate(
            flops=6 * main,
            transcendentals=2 * main,
            bytes_accessed=(x2.dtype.itemsize + t2.dtype.itemsize) * main
            + num_cores_eff * _SUBLANE * lane * 4,
        )

        partials = pl.pallas_call(
            kernel,
            out_shape=jax.ShapeDtypeStruct((num_cores_eff, _SUBLANE, lane),
                                           jnp.float32),
            grid_spec=pltpu.PrefetchScalarGridSpec(
                num_scalar_prefetch=0,
                grid=(num_cores_eff, tiles_per_core),
                in_specs=[
                    pl.BlockSpec((tile_rows_eff, lane), in_map),
                    pl.BlockSpec((tile_rows_eff, lane), in_map),
                ],
                # Per-core resident accumulator: same block across the inner
                # (reduction) axis, distinct block per core.
                out_specs=pl.BlockSpec((None, _SUBLANE, lane),
                                       lambda c, i: (c, 0, 0)),
            ),
            compiler_params=pltpu.CompilerParams(
                # Outer axis: independent per-core partials -> parallel
                # (megacore on v7x).  Inner axis: reduction -> arbitrary.
                dimension_semantics=("parallel", "arbitrary"),
                # 2 inputs x 2 buffers x <=8 MiB + tiny accumulator; safe on
                # every generation (v7x physical VMEM is 64 MiB per TC).
                vmem_limit_bytes=48 * 1024 * 1024,
            ),
            cost_estimate=cost,
            interpret=interpret,
        )(x2, t2)

        # Single small cross-lane reduce + divide, done once outside the kernel.
        loss_sum = loss_sum + jnp.sum(partials)

    if rem > 0:
        # Ragged tail (< 128 elements): pure JAX, negligible.
        xt = x_flat[main:].astype(jnp.float32)
        tt = t_flat[main:].astype(jnp.float32)
        loss_sum = loss_sum + jnp.sum(_bce_with_logits(xt, tt))

    return loss_sum / jnp.float32(total)


def elo_loss_ref(output, target):
    x = output.astype(jnp.float32)
    t = target.astype(jnp.float32)
    return jnp.mean(_bce_with_logits(x, t))


if __name__ == "__main__":
    key = jax.random.PRNGKey(0)
    k1, k2, k3, k4, k5, k6, k7, k8 = jax.random.split(key, 8)

    checks = []

    # Case 1: lane-aligned batch (B=16 comparisons, N=128): single-tile fast
    # path, no mask, no pad, no slice copy.
    out_a = jax.random.normal(k1, (16, 128), dtype=jnp.float32)
    tgt_a = jax.random.uniform(k2, (16, 128), dtype=jnp.float32)
    checks.append((elo_loss(out_a, tgt_a), elo_loss_ref(out_a, tgt_a)))

    # Case 2: odd shape -> lane-aligned prefix in the kernel + tiny pure-JAX tail.
    out_b = jax.random.normal(k3, (6, 50), dtype=jnp.float32)
    tgt_b = jax.random.uniform(k4, (6, 50), dtype=jnp.float32)
    checks.append((elo_loss(out_b, tgt_b), elo_loss_ref(out_b, tgt_b)))

    # Case 3: multi-tile grid with a partial last tile (row mask gated to the
    # edge tile only) and a 2-way core split.
    out_c = jax.random.normal(k5, (100, 128), dtype=jnp.float32)
    tgt_c = jax.random.uniform(k6, (100, 128), dtype=jnp.float32)
    checks.append((elo_loss(out_c, tgt_c, tile_rows=32, num_cores=2),
                   elo_loss_ref(out_c, tgt_c)))

    # Case 4: bf16 inputs + an uneven core split (clamped duplicate tile
    # contributes zero).
    out_d = jax.random.normal(k7, (96, 128), dtype=jnp.float32).astype(jnp.bfloat16)
    tgt_d = jax.random.uniform(k8, (96, 128), dtype=jnp.float32).astype(jnp.bfloat16)
    checks.append((elo_loss(out_d, tgt_d, tile_rows=32, num_cores=2),
                   elo_loss_ref(out_d, tgt_d)))

    for got, want in checks:
        got = jax.block_until_ready(got)
        want = jax.block_until_ready(want)
        assert jnp.allclose(got, want, rtol=1e-5, atol=1e-5), (got, want)

    print("KERNEL_OK")
</pallas_src>

<mosaic_0001>
module attributes {stable_mosaic.version = 11 : i64} {
  func.func @_elo_loss_kernel(%arg0: i32, %arg1: i32, %arg2: memref<16x128xf32, #tpu.memory_space<vmem>>, %arg3: memref<16x128xf32, #tpu.memory_space<vmem>>, %arg4: memref<1x8x128xf32, #tpu.memory_space<vmem>>) attributes {dimension_semantics = [#tpu.dimension_semantics<parallel>, #tpu.dimension_semantics<arbitrary>], iteration_bounds = array<i64: 1, 1>, scalar_prefetch = 0 : i64, scratch_operands = 0 : i64, tpu.core_type = #tpu.core_type<tc>, window_params = [{transform_indices = @transform_0, window_bounds = array<i64: 16, 128>}, {transform_indices = @transform_1, window_bounds = array<i64: 16, 128>}, {transform_indices = @transform_2, window_bounds = array<i64: 1, 8, 128>}]} {
    %c0_i32 = arith.constant 0 : i32
    %0 = arith.cmpi eq, %arg1, %c0_i32 : i32
    %1 = arith.extui %0 : i1 to i32
    %c0_i32_0 = arith.constant 0 : i32
    %2 = arith.cmpi ne, %1, %c0_i32_0 : i32
    scf.if %2 {
      %cst_12 = arith.constant 0.000000e+00 : f32
      %23 = vector.broadcast %cst_12 : f32 to vector<8x128xf32>
      %c0_13 = arith.constant 0 : index
      %c0_14 = arith.constant 0 : index
      %c0_15 = arith.constant 0 : index
      %24 = vector.load %arg4[%c0_13, %c0_14, %c0_15] : memref<1x8x128xf32, #tpu.memory_space<vmem>>, vector<1x8x128xf32>
      %25 = vector.shape_cast %24 : vector<1x8x128xf32> to vector<8x128xf32>
      %26 = vector.shape_cast %23 : vector<8x128xf32> to vector<1x8x128xf32>
      tpu.vector_store %arg4[%c0_13, %c0_14, %c0_15], %26 {strides = array<i32>} : memref<1x8x128xf32, #tpu.memory_space<vmem>>, vector<1x8x128xf32>,
    } else {
    }
    %c0 = arith.constant 0 : index
    %c0_1 = arith.constant 0 : index
    %3 = vector.load %arg2[%c0, %c0_1] : memref<16x128xf32, #tpu.memory_space<vmem>>, vector<16x128xf32>
    %c0_2 = arith.constant 0 : index
    %c0_3 = arith.constant 0 : index
    %4 = vector.load %arg3[%c0_2, %c0_3] : memref<16x128xf32, #tpu.memory_space<vmem>>, vector<16x128xf32>
    %cst = arith.constant 0.000000e+00 : f32
    %5 = vector.broadcast %cst : f32 to vector<16x128xf32>
    %6 = arith.maximumf %3, %5 : vector<16x128xf32>
    %7 = arith.mulf %3, %4 : vector<16x128xf32>
    %8 = arith.subf %6, %7 : vector<16x128xf32>
    %9 = math.absf %3 : vector<16x128xf32>
    %cst_4 = arith.constant 0.000000e+00 : f32
    %10 = vector.broadcast %cst_4 : f32 to vector<16x128xf32>
    %11 = arith.subf %10, %9 : vector<16x128xf32>
    %12 = math.exp %11 : vector<16x128xf32>
    %13 = math.log1p %12 : vector<16x128xf32>
    %14 = arith.addf %8, %13 : vector<16x128xf32>
    %c0_5 = arith.constant 0 : index
    %c0_6 = arith.constant 0 : index
    %c0_7 = arith.constant 0 : index
    %15 = vector.load %arg4[%c0_5, %c0_6, %c0_7] : memref<1x8x128xf32, #tpu.memory_space<vmem>>, vector<1x8x128xf32>
    %16 = vector.shape_cast %15 : vector<1x8x128xf32> to vector<8x128xf32>
    %17 = vector.shape_cast %14 : vector<16x128xf32> to vector<2x8x128xf32>
    %cst_8 = arith.constant dense<0.000000e+00> : vector<8x128xf32>
    %18 = vector.multi_reduction <add>, %17, %cst_8 [0] : vector<2x8x128xf32> to vector<8x128xf32>
    %19 = arith.addf %16, %18 : vector<8x128xf32>
    %c0_9 = arith.constant 0 : index
    %c0_10 = arith.constant 0 : index
    %c0_11 = arith.constant 0 : index
    %20 = vector.load %arg4[%c0_9, %c0_10, %c0_11] : memref<1x8x128xf32, #tpu.memory_space<vmem>>, vector<1x8x128xf32>
    %21 = vector.shape_cast %20 : vector<1x8x128xf32> to vector<8x128xf32>
    %22 = vector.shape_cast %19 : vector<8x128xf32> to vector<1x8x128xf32>
    tpu.vector_store %arg4[%c0_9, %c0_10, %c0_11], %22 {strides = array<i32>} : memref<1x8x128xf32, #tpu.memory_space<vmem>>, vector<1x8x128xf32>,
    return
  }
  func.func @transform_0(%arg0: i32, %arg1: i32) -> (i32, i32) {
    %c1_i32 = arith.constant 1 : i32
    %0 = arith.muli %arg0, %c1_i32 : i32
    %1 = arith.addi %0, %arg1 : i32
    %c0_i32 = arith.constant 0 : i32
    %2 = arith.minsi %1, %c0_i32 : i32
    %c0_i32_0 = arith.constant 0 : i32
    %c0_i32_1 = arith.constant 0 : i32
    return %2, %c0_i32_0 : i32, i32
  }
  func.func @transform_1(%arg0: i32, %arg1: i32) -> (i32, i32) {
    %c1_i32 = arith.constant 1 : i32
    %0 = arith.muli %arg0, %c1_i32 : i32
    %1 = arith.addi %0, %arg1 : i32
    %c0_i32 = arith.constant 0 : i32
    %2 = arith.minsi %1, %c0_i32 : i32
    %c0_i32_0 = arith.constant 0 : i32
    %c0_i32_1 = arith.constant 0 : i32
    return %2, %c0_i32_0 : i32, i32
  }
  func.func @transform_2(%arg0: i32, %arg1: i32) -> (i32, i32, i32) {
    %c0_i32 = arith.constant 0 : i32
    %c0_i32_0 = arith.constant 0 : i32
    %c0_i32_1 = arith.constant 0 : i32
    return %arg0, %c0_i32, %c0_i32_0 : i32, i32, i32
  }
}

</mosaic_0001>

<llo_original>
// kernel: tpu_custom_call.1
$region0: #{tpu_custom_call.1}
  #allocation0 [shape = 'u32[]', space=smem, size = 0x4, offset = 0x4, fixed_abs, tag = 'smem constant byte address 0x4 - core index']
  #allocation1 [shape = 'u32[144,128]{1,0:T(1,128)}', space=vmem, size = 0x12000, scoped, tag = 'internal scratch']
  %s0 = inlined_call_operand.hbm [shape: f32[16,128], index: 0, kind: input, shape index: {}]
  %s1 = inlined_call_operand.hbm [shape: f32[16,128], index: 1, kind: input, shape index: {}]
  %s2 = inlined_call_operand.hbm [shape: f32[1,8,128], index: 2, kind: output, shape index: {}]
  %s3 = sld [smem:[#allocation0]]
  $region30: #{tpu_custom_call.1} parent=0
    _
  %s5 = ssub.s32 1, %s3
  %s6 = scalar_select 0, %s5, %s3
  $region1: #{tpu_custom_call.1} parent=0
    #allocation2 [shape = 'u8[8192]{0}', space=vmem, size = 0x2000, scoped, tag = 'input window, operand 0, single buffered']
    #allocation3 [shape = 's32[1]{0}', space=sflag, size = 0x4, scoped, tag = 'scoped memory for tpu_custom_call.1']
    #allocation4 [shape = 's32[1]{0}', space=sflag, size = 0x4, scoped, tag = 'scoped memory for tpu_custom_call.1']
    #allocation5 [shape = 'u8[8192]{0}', space=vmem, size = 0x2000, scoped, tag = 'input window, operand 1, single buffered']
    #allocation6 [shape = 's32[1]{0}', space=sflag, size = 0x4, scoped, tag = 'scoped memory for tpu_custom_call.1']
    #allocation7 [shape = 'u8[4096]{0}', space=vmem, size = 0x1000, scoped, tag = 'output window, operand 0, single buffered']
    %7 = vsyncpa [#allocation3], 0
    %8 = vsyncpa [#allocation6], 0
    %9 = vsyncpa [#allocation4], 0
    // Predicated region
    $region2: #{tpu_custom_call.1} parent=1 // pred_check
      _
    $region3: #{tpu_custom_call.1} parent=1 // pred_check_branch
      %11 = sbr.rel (0) target = $region5
    $region4: #{tpu_custom_call.1} parent=1 // pred_region
      %s12 = sadd.s32 0, 0
      %p13 = scmp.lt.s32.totalorder %s12, 0
      %s14 = scalar_select %p13, %s12, 0
      %s15 = smul.u32 2, %s14
      %s17 = ssub.s32 256, 256
      %18 = vsyncadd [#allocation3], %s17
      %s19 = smul.addr %s15, 128
      %s20 = scalar_lea.hbm %s0, %s19
      %s21 = sshll.u32 [#allocation2], 4
      %s22 = int_to_ptr.vmem [resolvable:$true] %s21
      %27 = dma.hbm_to_vmem [thread:$0]  %s20, 256, %s22, [#allocation3], 128, 128, 8
    $region5: #{tpu_custom_call.1} parent=1 // pred_fallthru
      _
    // Predicated region
    $region6: #{tpu_custom_call.1} parent=1 // pred_check
      _
    $region7: #{tpu_custom_call.1} parent=1 // pred_check_branch
      %29 = sbr.rel (0) target = $region9
    $region8: #{tpu_custom_call.1} parent=1 // pred_region
      %s30 = sadd.s32 0, 0
      %p31 = scmp.lt.s32.totalorder %s30, 0
      %s32 = scalar_select %p31, %s30, 0
      %s33 = smul.u32 2, %s32
      %s35 = ssub.s32 256, 256
      %36 = vsyncadd [#allocation6], %s35
      %s37 = smul.addr %s33, 128
      %s38 = scalar_lea.hbm %s1, %s37
      %s39 = sshll.u32 [#allocation5], 4
      %s40 = int_to_ptr.vmem [resolvable:$true] %s39
      %45 = dma.hbm_to_vmem [thread:$0]  %s38, 256, %s40, [#allocation6], 128, 128, 8
    $region9: #{tpu_custom_call.1} parent=1 // pred_fallthru
      _
    // Predicated region
    $region10: #{tpu_custom_call.1} parent=1 // pred_check
      _
    $region11: #{tpu_custom_call.1} parent=1 // pred_check_branch
      %47 = sbr.rel (0) target = $region13
    $region12: #{tpu_custom_call.1} parent=1 // pred_region
      %48 = dma.done [#allocation3], 256
    $region13: #{tpu_custom_call.1} parent=1 // pred_fallthru
      _
    // Predicated region
    $region14: #{tpu_custom_call.1} parent=1 // pred_check
      _
    $region15: #{tpu_custom_call.1} parent=1 // pred_check_branch
      %50 = sbr.rel (0) target = $region17
    $region16: #{tpu_custom_call.1} parent=1 // pred_region
      %51 = dma.done [#allocation6], 256
    $region17: #{tpu_custom_call.1} parent=1 // pred_fallthru
      _
    %s52 = sadd.s32 0, 0
    %p53 = scmp.lt.s32.totalorder %s52, 0
    %s54 = scalar_select %p53, %s52, 0
    %s55 = smul.u32 2, %s54
    %s56 = sadd.s32 0, 0
    %p57 = scmp.lt.s32.totalorder %s56, 0
    %s58 = scalar_select %p57, %s56, 0
    %s59 = smul.u32 2, %s58
    %p60 = scmp.eq.s32.totalorder 0, 0
    // Predicated region
    $region18: #{tpu_custom_call.1} parent=1 // pred_check
      %p61 = pneg %p60
    $region19: #{tpu_custom_call.1} parent=1 // pred_check_branch
      %63 = sbr.rel (%p61) target = $region21
    $region20: #{tpu_custom_call.1} parent=1 // pred_region
      %64 = vst [vmem:[#allocation7] sm:$0xff] 0.0
    $region21: #{tpu_custom_call.1} parent=1 // pred_fallthru
      _
    %v65 = vld [vmem:[#allocation2] sm:$0xff]
    %v66 = vld [vmem:[#allocation2 + $0x8] sm:$0xff]
    %v67 = vld [vmem:[#allocation5] sm:$0xff]
    %v68 = vld [vmem:[#allocation5 + $0x8] sm:$0xff]
    %v69 = vmax.f32 %v65, 0.0
    %v70 = vmax.f32 %v66, 0.0
    %v71 = vmul.f32 %v65, %v67
    %v72 = vmul.f32 %v66, %v68
    %v73 = vsub.f32 %v69, %v71
    %v74 = vsub.f32 %v70, %v72
    %v75 = vand.u32 2147483647, %v65
    %v76 = vand.u32 2147483647, %v66
    %v77 = vsub.f32 0.0, %v75
    %v78 = vsub.f32 0.0, %v76
    %v79 = vmul.f32 %v77, 1.442695
    %v80 = vpow.pop %v79
    %v81 = vmul.f32 %v78, 1.442695
    %v82 = vpow.pop %v81
    %v83 = vadd.f32 %v80, 1.0
    %v84 = vlog2.pop %v83
    %v85 = vmul.f32 %v84, 0.6931472
    %v86 = vmul.f32 -0.5, %v80
    %v87 = vadd.f32 %v86, 1.0
    %v88 = vmul.f32 %v87, %v80
    %v89 = vand.u32 2147483647, %v80
    %vm90 = vcmp.lt.f32.partialorder %v89, 0.0004427343
    %v91 = vsel %vm90, %v88, %v85
    %v92 = vadd.f32 %v82, 1.0
    %v93 = vlog2.pop %v92
    %v94 = vmul.f32 %v93, 0.6931472
    %v95 = vmul.f32 -0.5, %v82
    %v96 = vadd.f32 %v95, 1.0
    %v97 = vmul.f32 %v96, %v82
    %v98 = vand.u32 2147483647, %v82
    %vm99 = vcmp.lt.f32.partialorder %v98, 0.0004427343
    %v100 = vsel %vm99, %v97, %v94
    %v101 = vadd.f32 %v73, %v91
    %v102 = vadd.f32 %v74, %v100
    %v103 = vld [vmem:[#allocation7] sm:$0xff]
    %v104 = vadd.f32 %v101, %v102
    %v105 = vadd.f32 %v103, %v104
    %106 = vst [vmem:[#allocation7] sm:$0xff] %v105
    // Predicated region
    $region22: #{tpu_custom_call.1} parent=1 // pred_check
      _
    $region23: #{tpu_custom_call.1} parent=1 // pred_check_branch
      %108 = sbr.rel (0) target = $region25
    $region24: #{tpu_custom_call.1} parent=1 // pred_region
      %s110 = ssub.s32 128, 128
      %111 = vsyncadd [#allocation4], %s110
      %s113 = sshll.u32 [#allocation7], 4
      %s114 = int_to_ptr.vmem [resolvable:$true] %s113
      %116 = dma.vmem_to_hbm [thread:$0]  %s114, 128, %s2, [#allocation4]
    $region25: #{tpu_custom_call.1} parent=1 // pred_fallthru
      _
    // Predicated region
    $region26: #{tpu_custom_call.1} parent=1 // pred_check
      _
    $region27: #{tpu_custom_call.1} parent=1 // pred_check_branch
      %118 = sbr.rel (0) target = $region29
    $region28: #{tpu_custom_call.1} parent=1 // pred_region
      %119 = dma.done [#allocation4], 128
    $region29: #{tpu_custom_call.1} parent=1 // pred_fallthru
      _
    %120 = vsyncpa [#allocation3], 1
    %121 = vsyncpa [#allocation6], 1
    %122 = vsyncpa [#allocation4], 1

</llo_original>
